<compile_context>
chip_gen: v7x
topology: tpu7x:2x2x1
jax: 0.10.0
libtpu: 0.0.40
codegen_flags: <defaults>
</compile_context>

<pallas_src>
import functools

import jax
import jax.numpy as jnp
from jax import lax
from jax.experimental import pallas as pl
from jax.experimental.pallas import tpu as pltpu


# ----------------------------------------------------------------------------
# 1x1 convolution: batch folded into lanes, single matmul, bf16 MXU inputs
# ----------------------------------------------------------------------------
def _conv1x1_kernel(x_ref, w_ref, b_ref, o_ref):
    # x_ref: (Cin, B*HW), w_ref: (Cout, Cin), b_ref: (Cout, 1), o_ref: (Cout, B*HW)
    y = jnp.dot(w_ref[...].astype(jnp.bfloat16), x_ref[...].astype(jnp.bfloat16),
                preferred_element_type=jnp.float32)
    o_ref[...] = (y + b_ref[...]).astype(o_ref.dtype)


def conv1x1_pallas(x_flat, w, bias=None):
    """1x1 conv.  x_flat: (B, Cin, HW), w: (Cout, Cin) -> (B, Cout, HW)."""
    B, Cin, HW = x_flat.shape
    Cout = w.shape[0]
    if bias is None:
        bias = jnp.zeros((Cout, 1), jnp.float32)
    # weights are shared across batch -> fold batch into the lane axis (exact)
    x2d = jnp.transpose(x_flat, (1, 0, 2)).reshape(Cin, B * HW)
    y2d = pl.pallas_call(
        _conv1x1_kernel,
        out_shape=jax.ShapeDtypeStruct((Cout, B * HW), jnp.float32),
    )(x2d, w, bias)
    return jnp.transpose(y2d.reshape(Cout, B, HW), (1, 0, 2))


# ----------------------------------------------------------------------------
# FeatureRefinementModule kernel
# ----------------------------------------------------------------------------
def _build_patches_from_rolls(x, H, W):
    """Tap-major (9*C, HW) im2col patches built in-VMEM from rolled views of x (C, HW)."""
    HW = H * W
    lane = lax.broadcasted_iota(jnp.int32, (1, HW), 1)
    colw = (lane & (W - 1)) if (W & (W - 1)) == 0 else (lane % W)
    taps = []
    for kh in range(3):
        for kw in range(3):
            ky, kx = kh - 1, kw - 1
            s = ky * W + kx                               # tap reads x[:, n + s]
            xs = pltpu.roll(x, (-s) % HW, axis=1) if s != 0 else x
            valid = None
            if ky == -1:
                valid = lane >= W
            elif ky == 1:
                valid = lane < (HW - W)
            if kx == -1:
                cm = colw >= 1
                valid = cm if valid is None else valid & cm
            elif kx == 1:
                cm = colw <= (W - 2)
                valid = cm if valid is None else valid & cm
            if valid is not None:
                xs = xs * valid.astype(x.dtype)           # zero the padded border
            taps.append(xs)
    return jnp.concatenate(taps, axis=0)                  # rows = (kh*3+kw)*C + ci


def _make_refine_kernel(C, Crp, H, W, taps_in_kernel):
    def kernel(*refs):
        if taps_in_kernel:
            (x_ref, wqkv_ref, bqkv_ref, we_ref, bns_ref, bnb_ref, gamma_ref,
             o_ref) = refs
        else:
            (x_ref, p_ref, wqkv_ref, bqkv_ref, we_ref, bns_ref, bnb_ref,
             gamma_ref, o_ref) = refs

        x = x_ref[0]                                      # (C, HW) f32
        xb = x.astype(jnp.bfloat16)

        # fused Q/K/V 1x1 convs: one MXU matmul, rows = [V ; Q(zero-pad) ; K(zero-pad)]
        qkv = jnp.dot(wqkv_ref[...].astype(jnp.bfloat16), xb,
                      preferred_element_type=jnp.float32) + bqkv_ref[...]
        v = qkv[0:C]                                      # (C,   HW)
        q = qkv[C:C + Crp]                                # (Crp, HW) zero-padded rows
        k = qkv[C + Crp:C + 2 * Crp]                      # (Crp, HW)

        # attention, computed transposed: scores_t[j, i] = sum_r k[r, j] * q[r, i]
        scores_t = lax.dot_general(
            k.astype(jnp.bfloat16), q.astype(jnp.bfloat16),
            (((0,), (0,)), ((), ())), preferred_element_type=jnp.float32)
        scores_t = scores_t - jnp.max(scores_t, axis=0, keepdims=True)
        num = jnp.exp(scores_t)                           # (HW_j, HW_i)
        # deferred softmax normalization: scale the (C, HW) output, not the HWxHW map
        inv_den = pl.reciprocal(jnp.sum(num, axis=0, keepdims=True), approx=True)
        attn_feat = jnp.dot(v.astype(jnp.bfloat16), num.astype(jnp.bfloat16),
                            preferred_element_type=jnp.float32) * inv_den

        # enhance = ReLU(BN(conv3x3(x)))  via tap-major im2col matmul (conv bias=False)
        if taps_in_kernel:
            patches = _build_patches_from_rolls(x, H, W)
        else:
            patches = p_ref[0]
        enh = jnp.dot(we_ref[...].astype(jnp.bfloat16),
                      patches.astype(jnp.bfloat16),
                      preferred_element_type=jnp.float32)
        enh = jnp.maximum(enh * bns_ref[...] + bnb_ref[...], 0.0)

        o_ref[0] = (x + gamma_ref[0] * attn_feat + enh).astype(o_ref.dtype)

    return kernel


def refine_pallas(x, params):
    """FeatureRefinementModule forward.  x: (B, C, H, W) NCHW."""
    B, C, H, W = x.shape
    HW = H * W
    Cr = params["wq"].shape[0]
    Crp = ((Cr + 7) // 8) * 8          # pad Q/K rows to a sublane multiple (exact)
    pad = Crp - Cr

    wq_p = jnp.pad(params["wq"], ((0, pad), (0, 0)))
    bq_p = jnp.pad(params["bq"], ((0, pad), (0, 0)))
    wk_p = jnp.pad(params["wk"], ((0, pad), (0, 0)))
    bk_p = jnp.pad(params["bk"], ((0, pad), (0, 0)))
    w_qkv = jnp.concatenate([params["wv"], wq_p, wk_p], axis=0)   # (C + 2*Crp, C)
    b_qkv = jnp.concatenate([params["bv"], bq_p, bk_p], axis=0)   # (C + 2*Crp, 1)
    # 3x3 conv weight (C, C, 3, 3) OIHW -> tap-major (C, 9*C): col = (kh*3+kw)*C + ci
    we_st = jnp.transpose(params["we"], (0, 2, 3, 1)).reshape(C, 9 * C)
    Cq = C + 2 * Crp

    taps_in_kernel = (HW % 128 == 0)   # stage 1; tiny stages keep host-side im2col
    x_flat = x.reshape(B, C, HW)

    inputs = [x_flat]
    in_specs = [pl.BlockSpec((1, C, HW), lambda b: (b, 0, 0))]
    if not taps_in_kernel:
        inputs.append(_im2col_3x3(x))
        in_specs.append(pl.BlockSpec((1, 9 * C, HW), lambda b: (b, 0, 0)))
    inputs += [w_qkv, b_qkv, we_st, params["bn_scale"], params["bn_shift"],
               params["gamma"]]
    in_specs += [
        pl.BlockSpec((Cq, C), lambda b: (0, 0)),
        pl.BlockSpec((Cq, 1), lambda b: (0, 0)),
        pl.BlockSpec((C, 9 * C), lambda b: (0, 0)),
        pl.BlockSpec((C, 1), lambda b: (0, 0)),
        pl.BlockSpec((C, 1), lambda b: (0, 0)),
        pl.BlockSpec(memory_space=pltpu.MemorySpace.SMEM),        # gamma scalar
    ]

    out_flat = pl.pallas_call(
        _make_refine_kernel(C, Crp, H, W, taps_in_kernel),
        out_shape=jax.ShapeDtypeStruct((B, C, HW), jnp.float32),
        grid=(B,),
        in_specs=in_specs,
        out_specs=pl.BlockSpec((1, C, HW), lambda b: (b, 0, 0)),
        compiler_params=pltpu.CompilerParams(dimension_semantics=("parallel",)),
    )(*inputs)
    return out_flat.reshape(B, C, H, W)


# ----------------------------------------------------------------------------
# Plain-JAX glue (layout only)
# ----------------------------------------------------------------------------
def _im2col_3x3(x):
    """NCHW -> (B, 9*C, H*W) patches, tap-major: row index = (kh*3+kw)*C + ci."""
    B, C, H, W = x.shape
    xp = jnp.pad(x, ((0, 0), (0, 0), (1, 1), (1, 1)))
    taps = [xp[:, :, kh:kh + H, kw:kw + W] for kh in range(3) for kw in range(3)]
    patches = jnp.stack(taps, axis=1)                             # (B, 9, C, H, W)
    return patches.reshape(B, 9 * C, H * W)


def standin_backbone(x, stage_weights):
    """Stride-2 1x1-conv pyramid standing in for the (unavailable) resnet trunk."""
    feats = []
    h = x
    for w in stage_weights:
        h = h[:, :, ::2, ::2]                      # stride-2 downsample (glue)
        B, C, H, W = h.shape
        h = conv1x1_pallas(h.reshape(B, C, H * W), w).reshape(B, w.shape[0], H, W)
        feats.append(h)
    return feats


# ----------------------------------------------------------------------------
# Parameter init (deterministic, shapes follow the PyTorch __init__)
# ----------------------------------------------------------------------------
def init_frm_params(key, C, reduction_ratio=8):
    Cr = max(C // reduction_ratio, 1)
    ks = jax.random.split(key, 9)
    n = lambda k, s: 0.1 * jax.random.normal(k, s, jnp.float32)
    bn_eps = 1e-5
    bn_w, bn_b = n(ks[6], (C, 1)) + 1.0, n(ks[7], (C, 1))
    bn_mean, bn_var = jnp.zeros((C, 1), jnp.float32), jnp.ones((C, 1), jnp.float32)
    bn_scale = bn_w / jnp.sqrt(bn_var + bn_eps)            # eval-mode BatchNorm
    bn_shift = bn_b - bn_mean * bn_scale
    return {
        "wq": n(ks[0], (Cr, C)), "bq": n(ks[1], (Cr, 1)),
        "wk": n(ks[2], (Cr, C)), "bk": n(ks[3], (Cr, 1)),
        "wv": n(ks[4], (C, C)), "bv": n(ks[5], (C, 1)),
        "we": n(ks[8], (C, C, 3, 3)),                      # 3x3 conv, OIHW, bias=False
        "bn_scale": bn_scale, "bn_shift": bn_shift,
        "gamma": jnp.full((1,), 0.5, jnp.float32),         # nonzero so attention is exercised
    }


def refine_reference(x, p):
    """Pure-JAX f32 reference of FeatureRefinementModule for correctness checks."""
    B, C, H, W = x.shape
    HW = H * W
    xf = x.reshape(B, C, HW)
    q = jnp.einsum("rc,bcn->brn", p["wq"], xf) + p["bq"][None]
    k = jnp.einsum("rc,bcn->brn", p["wk"], xf) + p["bk"][None]
    v = jnp.einsum("oc,bcn->bon", p["wv"], xf) + p["bv"][None]
    attn = jax.nn.softmax(jnp.einsum("bri,brj->bij", q, k), axis=-1)
    attn_feat = jnp.einsum("bcj,bij->bci", v, attn)
    enh = lax.conv_general_dilated(x, p["we"], (1, 1), ((1, 1), (1, 1)),
                                   dimension_numbers=("NCHW", "OIHW", "NCHW"))
    enh = enh.reshape(B, C, HW)
    enh = jnp.maximum(enh * p["bn_scale"][None] + p["bn_shift"][None], 0.0)
    return (xf + p["gamma"][0] * attn_feat + enh).reshape(B, C, H, W)


# ----------------------------------------------------------------------------
# ResNetWrapper forward
# ----------------------------------------------------------------------------
def resnet_wrapper_forward(x, stage_weights, refine_params, out_w):
    features = standin_backbone(x, stage_weights)          # self.model(x)
    features = [refine_pallas(f, p) for f, p in zip(features, refine_params)]
    # final out = conv1x1(last_channels, featuremap_out_channel, bias=False)
    B, C, H, W = features[-1].shape
    last = conv1x1_pallas(features[-1].reshape(B, C, H * W), out_w)
    features[-1] = last.reshape(B, out_w.shape[0], H, W)
    return features


if __name__ == "__main__":
    key = jax.random.PRNGKey(0)
    B, Cin, Himg, Wimg = 2, 3, 32, 32
    in_channels = [16, 32, 64, 64]                         # expansion = 1 (resnet18)
    featuremap_out_channel = 16

    keys = jax.random.split(key, 2 + 2 * len(in_channels))
    x = jax.random.normal(keys[0], (B, Cin, Himg, Wimg), jnp.float32)

    stage_weights, prev = [], Cin
    for i, c in enumerate(in_channels):
        stage_weights.append(0.1 * jax.random.normal(keys[1 + i], (c, prev), jnp.float32))
        prev = c

    refine_params = [init_frm_params(keys[1 + len(in_channels) + i], c)
                     for i, c in enumerate(in_channels)]
    out_w = 0.1 * jax.random.normal(keys[-1], (featuremap_out_channel, in_channels[-1]),
                                    jnp.float32)

    feats = resnet_wrapper_forward(x, stage_weights, refine_params, out_w)
    feats = [jax.block_until_ready(f) for f in feats]

    # --- correctness checks against pure-JAX f32 references (bf16 MXU tolerance) ---
    raw_feats = standin_backbone(x, stage_weights)
    x_ds = x[:, :, ::2, ::2]
    ref_feat0 = jnp.einsum("oc,bchw->bohw", stage_weights[0], x_ds)
    assert jnp.allclose(raw_feats[0], ref_feat0, rtol=2e-2, atol=2e-2), "conv1x1 mismatch"

    for f_raw, p in zip(raw_feats, refine_params):
        got = refine_pallas(f_raw, p)
        ref = refine_reference(f_raw, p)
        assert jnp.allclose(got, ref, rtol=2e-2, atol=2e-2), "refinement mismatch"

    expected_shapes = [(B, 16, 16, 16), (B, 32, 8, 8), (B, 64, 4, 4),
                       (B, featuremap_out_channel, 2, 2)]
    assert [tuple(f.shape) for f in feats] == expected_shapes
    print("KERNEL_OK")
</pallas_src>

<mosaic_0001>
module attributes {stable_mosaic.version = 11 : i64} {
  func.func @_conv1x1_kernel(%arg0: memref<3x512xf32, #tpu.memory_space<vmem>>, %arg1: memref<16x3xf32, #tpu.memory_space<vmem>>, %arg2: memref<16x1xf32, #tpu.memory_space<vmem>>, %arg3: memref<16x512xf32, #tpu.memory_space<vmem>>) attributes {dimension_semantics = [], scalar_prefetch = 0 : i64, scratch_operands = 0 : i64, tpu.core_type = #tpu.core_type<tc>} {
    %c0 = arith.constant 0 : index
    %c0_0 = arith.constant 0 : index
    %0 = vector.load %arg1[%c0, %c0_0] : memref<16x3xf32, #tpu.memory_space<vmem>>, vector<16x3xf32>
    %1 = arith.truncf %0 : vector<16x3xf32> to vector<16x3xbf16>
    %c0_1 = arith.constant 0 : index
    %c0_2 = arith.constant 0 : index
    %2 = vector.load %arg0[%c0_1, %c0_2] : memref<3x512xf32, #tpu.memory_space<vmem>>, vector<3x512xf32>
    %3 = arith.truncf %2 : vector<3x512xf32> to vector<3x512xbf16>
    %cst = arith.constant dense<0.000000e+00> : vector<16x512xf32>
    %4 = tpu.matmul %1, %3, %cst {dimension_numbers = #tpu.dot_dimension_numbers<[1], [0], [0], [1], [0, 0, 1, 1], [], []>} : vector<16x3xbf16>, vector<3x512xbf16>, vector<16x512xf32> -> vector<16x512xf32>
    %c0_3 = arith.constant 0 : index
    %c0_4 = arith.constant 0 : index
    %5 = vector.load %arg2[%c0_3, %c0_4] : memref<16x1xf32, #tpu.memory_space<vmem>>, vector<16x1xf32>
    %6 = vector.broadcast %5 : vector<16x1xf32> to vector<16x512xf32>
    %7 = arith.addf %4, %6 : vector<16x512xf32>
    %c0_5 = arith.constant 0 : index
    %c0_6 = arith.constant 0 : index
    %8 = vector.load %arg3[%c0_5, %c0_6] : memref<16x512xf32, #tpu.memory_space<vmem>>, vector<16x512xf32>
    tpu.vector_store %arg3[%c0_5, %c0_6], %7 {strides = array<i32>} : memref<16x512xf32, #tpu.memory_space<vmem>>, vector<16x512xf32>,
    return
  }
}

</mosaic_0001>

<llo_original>
// kernel: tpu_custom_call.1
$region0: #{tpu_custom_call.1}
  #allocation0 [shape = 'u32[]', space=smem, size = 0x4, offset = 0x4, fixed_abs, tag = 'smem constant byte address 0x4 - core index']
  #allocation1 [shape = 'u32[144,128]{1,0:T(1,128)}', space=vmem, size = 0x12000, scoped, tag = 'internal scratch']
  %s0 = inlined_call_operand.vmem [shape: f32[3,512], index: 0, kind: input, shape index: {}]
  %s1 = inlined_call_operand.vmem [shape: f32[16,3], index: 1, kind: input, shape index: {}]
  %s2 = inlined_call_operand.vmem [shape: f32[16,1], index: 2, kind: input, shape index: {}]
  %s3 = inlined_call_operand.hbm [shape: f32[16,512], index: 3, kind: output, shape index: {}]
  %s4 = sld [smem:[#allocation0]]
  $region22: #{tpu_custom_call.1} parent=0
    _
  %s6 = ssub.s32 1, %s4
  %s7 = scalar_select 0, %s6, %s4
  $region1: #{tpu_custom_call.1} parent=0
    #allocation2 [shape = 'u8[32768]{0}', space=vmem, size = 0x8000, scoped, tag = 'output window, operand 0, single buffered']
    #allocation3 [shape = 's32[1]{0}', space=sflag, size = 0x4, scoped, tag = 'scoped memory for tpu_custom_call.1']
    %8 = vsyncpa [#allocation3], 0
    // Predicated region
    $region2: #{tpu_custom_call.1} parent=1 // pred_check
      _
    $region3: #{tpu_custom_call.1} parent=1 // pred_check_branch
      %10 = sbr.rel (0) target = $region5
    $region4: #{tpu_custom_call.1} parent=1 // pred_region
      _
    $region5: #{tpu_custom_call.1} parent=1 // pred_fallthru
      _
    // Predicated region
    $region6: #{tpu_custom_call.1} parent=1 // pred_check
      _
    $region7: #{tpu_custom_call.1} parent=1 // pred_check_branch
      %12 = sbr.rel (0) target = $region9
    $region8: #{tpu_custom_call.1} parent=1 // pred_region
      _
    $region9: #{tpu_custom_call.1} parent=1 // pred_fallthru
      _
    // Predicated region
    $region10: #{tpu_custom_call.1} parent=1 // pred_check
      _
    $region11: #{tpu_custom_call.1} parent=1 // pred_check_branch
      %14 = sbr.rel (0) target = $region13
    $region12: #{tpu_custom_call.1} parent=1 // pred_region
      _
    $region13: #{tpu_custom_call.1} parent=1 // pred_fallthru
      _
    %v16 = vld [vmem:[%s1] sm:$0xff]
    %v17 = vld [vmem:[%s1 + $0x8] sm:$0xff]
    %v18 = vpack.c.bf16 %v17, %v16
    %v19 = vld [vmem:[%s0] sm:$0x77]
    %v20 = vld [vmem:[%s0 + $0x8] sm:$0x77]
    %v23 = vcombine.high %v19, %v19
    %v24 = vcombine.high %v20, %v20
    %v27 = vpack.c.bf16 %v19, %v19
    %v28 = vpack.c.bf16 %v23, %v23
    %v29 = vpack.c.bf16 %v20, %v20
    %v30 = vpack.c.bf16 %v24, %v24
    %v31 = vld [vmem:[%s2] sm:$0xff]
    %v32 = vld [vmem:[%s2 + $0x8] sm:$0xff]
    %34 = vset.pattern.permute.xlu0 0
    %35 = vperm.xlu0 %34, %v31
    %v36 = vpop.permute.xlu0 %35
    %39 = vset.pattern.permute.xlu0 0
    %40 = vperm.xlu0 %39, %v32
    %v41 = vpop.permute.xlu0 %40
    %vm43 = vcmask 23552
    %v45 = vsel %vm43, %v18, 0
    %vm47 = vcmask 1040384
    %vm48 = vcmask 1041408
    %v49 = vsel %vm47, 4294967295, 65535
    %v50 = vsel %vm48, %v49, 0
    %v52 = vand.u32 %v27, %v50
    %v55 = vand.u32 %v28, %v50
    %v58 = vand.u32 %v29, %v50
    %v61 = vand.u32 %v30, %v50
    %63 = vmatprep.subr.bf16.mxu0 %v55
    %64 = vmatpush1.bf16.msra.mxu0 %v52
    %65 = vmatprep.subr.bf16.mxu0 0
    %66 = vmatpush1.bf16.msra.mxu0 0
    %67 = vmatprep.subr.bf16.mxu0 0
    %68 = vmatpush1.bf16.msra.mxu0 0
    %69 = vmatprep.subr.bf16.mxu0 0
    %70 = vmatpush1.bf16.msra.mxu0 0
    %71 = vmatprep.subr.bf16.mxu0 0
    %72 = vmatpush1.bf16.msra.mxu0 0
    %73 = vmatprep.subr.bf16.mxu0 0
    %74 = vmatpush1.bf16.msra.mxu0 0
    %75 = vmatprep.subr.bf16.mxu0 0
    %76 = vmatpush1.bf16.msra.mxu0 0
    %77 = vmatprep.subr.bf16.mxu0 0
    %78 = vmatpush1.bf16.msra.mxu0 0
    %79 = vmatprep.subr.bf16.mxu0 0
    %80 = vmatpush1.bf16.msra.mxu0 0
    %81 = vmatprep.subr.bf16.mxu0 0
    %82 = vmatpush1.bf16.msra.mxu0 0
    %83 = vmatprep.subr.bf16.mxu0 0
    %84 = vmatpush1.bf16.msra.mxu0 0
    %85 = vmatprep.subr.bf16.mxu0 0
    %86 = vmatpush1.bf16.msra.mxu0 0
    %87 = vmatprep.subr.bf16.mxu0 0
    %88 = vmatpush1.bf16.msra.mxu0 0
    %89 = vmatprep.subr.bf16.mxu0 0
    %90 = vmatpush1.bf16.msra.mxu0 0
    %91 = vmatprep.subr.bf16.mxu0 0
    %92 = vmatpush1.bf16.msra.mxu0 0
    %93 = vmatprep.subr.bf16.mxu0 0
    %94 = vmatpush1.bf16.msra.mxu0 0
    %95 = vmatprep.mubr.bf16.mxu0 0
    %96 = vmatmul.mubr.bf16.gmra.mrb[0].mxu0 %v45
    %v97 = vpop.f32.mrb[0].mxu0
    %v98 = vadd.f32 %v36, %v97
    %v99 = vpop.f32.mrb[0].mxu0
    %v100 = vadd.f32 %v36, %v99
    %v101 = vpop.f32.mrb[0].mxu0
    %v102 = vadd.f32 %v41, %v101
    %v103 = vpop.f32.mrb[0].mxu0
    %v104 = vadd.f32 %v41, %v103
    %105 = vdwg.mxu0
    %106 = vmatprep.subr.bf16.mxu0 %v61
    %107 = vmatpush1.bf16.msra.mxu0 %v58
    %108 = vmatprep.subr.bf16.mxu0 0
    %109 = vmatpush1.bf16.msra.mxu0 0
    %110 = vmatprep.subr.bf16.mxu0 0
    %111 = vmatpush1.bf16.msra.mxu0 0
    %112 = vmatprep.subr.bf16.mxu0 0
    %113 = vmatpush1.bf16.msra.mxu0 0
    %114 = vmatprep.subr.bf16.mxu0 0
    %115 = vmatpush1.bf16.msra.mxu0 0
    %116 = vmatprep.subr.bf16.mxu0 0
    %117 = vmatpush1.bf16.msra.mxu0 0
    %118 = vmatprep.subr.bf16.mxu0 0
    %119 = vmatpush1.bf16.msra.mxu0 0
    %120 = vmatprep.subr.bf16.mxu0 0
    %121 = vmatpush1.bf16.msra.mxu0 0
    %122 = vmatprep.subr.bf16.mxu0 0
    %123 = vmatpush1.bf16.msra.mxu0 0
    %124 = vmatprep.subr.bf16.mxu0 0
    %125 = vmatpush1.bf16.msra.mxu0 0
    %126 = vmatprep.subr.bf16.mxu0 0
    %127 = vmatpush1.bf16.msra.mxu0 0
    %128 = vmatprep.subr.bf16.mxu0 0
    %129 = vmatpush1.bf16.msra.mxu0 0
    %130 = vmatprep.subr.bf16.mxu0 0
    %131 = vmatpush1.bf16.msra.mxu0 0
    %132 = vmatprep.subr.bf16.mxu0 0
    %133 = vmatpush1.bf16.msra.mxu0 0
    %134 = vmatprep.subr.bf16.mxu0 0
    %135 = vmatpush1.bf16.msra.mxu0 0
    %136 = vmatprep.subr.bf16.mxu0 0
    %137 = vmatpush1.bf16.msra.mxu0 0
    %138 = vmatprep.mubr.bf16.mxu0 0
    %139 = vmatmul.mubr.bf16.gmra.mrb[0].mxu0 %v45
    %v140 = vpop.f32.mrb[0].mxu0
    %v141 = vadd.f32 %v36, %v140
    %v142 = vpop.f32.mrb[0].mxu0
    %v143 = vadd.f32 %v36, %v142
    %v144 = vpop.f32.mrb[0].mxu0
    %v145 = vadd.f32 %v41, %v144
    %v146 = vpop.f32.mrb[0].mxu0
    %v147 = vadd.f32 %v41, %v146
    %148 = vdwg.mxu0
    %149 = vst [vmem:[#allocation2] sm:$0xff] %v98
    %150 = vst [vmem:[#allocation2 + $0x8] sm:$0xff] %v100
    %151 = vst [vmem:[#allocation2 + $0x10] sm:$0xff] %v141
    %152 = vst [vmem:[#allocation2 + $0x18] sm:$0xff] %v143
    %153 = vst [vmem:[#allocation2 + $0x20] sm:$0xff] %v102
    %154 = vst [vmem:[#allocation2 + $0x28] sm:$0xff] %v104
    %155 = vst [vmem:[#allocation2 + $0x30] sm:$0xff] %v145
    %156 = vst [vmem:[#allocation2 + $0x38] sm:$0xff] %v147
    // Predicated region
    $region14: #{tpu_custom_call.1} parent=1 // pred_check
      _
    $region15: #{tpu_custom_call.1} parent=1 // pred_check_branch
      %158 = sbr.rel (0) target = $region17
    $region16: #{tpu_custom_call.1} parent=1 // pred_region
      %s160 = ssub.s32 1024, 1024
      %161 = vsyncadd [#allocation3], %s160
      %s162 = sshll.u32 [#allocation2], 4
      %s163 = int_to_ptr.vmem [resolvable:$true] %s162
      %168 = dma.vmem_to_hbm [thread:$0]  %s163, 1024, %s3, [#allocation3], 512, 512, 32
    $region17: #{tpu_custom_call.1} parent=1 // pred_fallthru
      _
    // Predicated region
    $region18: #{tpu_custom_call.1} parent=1 // pred_check
      _
    $region19: #{tpu_custom_call.1} parent=1 // pred_check_branch
      %170 = sbr.rel (0) target = $region21
    $region20: #{tpu_custom_call.1} parent=1 // pred_region
      %171 = dma.done [#allocation3], 1024
    $region21: #{tpu_custom_call.1} parent=1 // pred_fallthru
      _
    %172 = vsyncpa [#allocation3], 1

</llo_original>
